<compile_context>
chip_gen: v7x
topology: tpu7x:2x2x1
jax: 0.10.0
libtpu: 0.0.40
codegen_flags: <defaults>
</compile_context>

<pallas_src>
import functools

import jax
import jax.numpy as jnp
from jax.experimental import pallas as pl
from jax.experimental.pallas import tpu as pltpu


def _rope_kernel(x_ref, pos_ref, freq_ref, mask_ref, o_ref, *, pack, half):
    """One row-tile of the rotary embedding.

    x_ref    : (T, W)        activations, W = pack * H lanes
    pos_ref  : (pack, T, 1)  scaled positions, one slab per packed lane-group
    freq_ref : (pack, 1, W)  inv_freq per lane-group (zero outside the group)
    mask_ref : (1, W)        1.0 on "first half" lanes of every lane-group
    o_ref    : (T, W)        output
    """
    f32 = jnp.float32
    x = x_ref[...].astype(f32)
    W = x.shape[-1]

    # --- angles (float32) and cos/sin (EUP) ---------------------------------
    if pack == 1 and half % 128 == 0:
        # emb = cat(freqs, freqs): compute transcendentals once on `half`
        # lanes and tile them (vreg-aligned halves -> cheap concatenate).
        ang_h = pos_ref[0] * freq_ref[0][:, :half]          # (T, half)
        c_h = jnp.cos(ang_h)
        s_h = jnp.sin(ang_h)
        c = jnp.concatenate([c_h, c_h], axis=-1)            # (T, W)
        s = jnp.concatenate([s_h, s_h], axis=-1)
    else:
        ang = pos_ref[0] * freq_ref[0]                      # (T, 1) * (1, W)
        for g in range(1, pack):
            ang = ang + pos_ref[g] * freq_ref[g]
        c = jnp.cos(ang)
        s = jnp.sin(ang)

    # --- group-wise rotate_half via lane rotations (XLU) --------------------
    r1 = pltpu.roll(x, half, axis=1)
    r2 = r1 if (W - half) == half else pltpu.roll(x, W - half, axis=1)

    # Roll a lane-index probe by the same amount so the result is correct no
    # matter which rotation direction pltpu.roll implements.
    idx = jax.lax.broadcasted_iota(jnp.int32, (1, W), 1).astype(f32)
    i1 = pltpu.roll(idx, half, axis=1)
    plus = jnp.where(idx < (W - half), idx + half, idx + (half - W))  # (l+half) mod W
    r1_is_plus = i1 == plus                                            # (1, W)

    m_first = mask_ref[...]            # 1.0 where (lane % H) <  half
    m_second = 1.0 - m_first           # 1.0 where (lane % H) >= half
    # rotate_half(x) = -x[l+half] on first-half lanes, +x[l-half] on second-half.
    w1 = jnp.where(r1_is_plus, -m_first, m_second)   # coefficient of r1
    w2 = jnp.where(r1_is_plus, m_second, -m_first)   # coefficient of r2

    o = x * c + r1 * (s * w1) + r2 * (s * w2)
    o_ref[...] = o.astype(o_ref.dtype)


def cpmbee_rotary_embedding(x, x_pos, inv_freq, distance_scale, *,
                            vmem_budget_bytes=8 * 1024 * 1024):
    """Pallas TPU forward of CpmBeeRotaryEmbedding.

    x:     (..., H) activations (any float dtype)
    x_pos: (...)    positions (same leading shape as x)
    """
    orig_shape = x.shape
    H = int(orig_shape[-1])
    if H % 2 != 0:
        raise ValueError("hidden size must be even for rotate_half")
    half = H // 2
    dtype = x.dtype

    inv_freq = jnp.asarray(inv_freq).reshape(-1).astype(jnp.float32)
    if inv_freq.shape[0] != half:
        raise ValueError("inv_freq must have H // 2 entries")

    # Lane packing: fold `pack` logical rows into one 128-lane row when possible.
    pack = 128 // H if (H < 128 and 128 % H == 0) else 1
    W = pack * H

    n_rows = x.size // H
    x2d = x.reshape(n_rows, H)
    # Fold distance_scale once into the (tiny) position vector, in float32.
    pos = x_pos.reshape(n_rows).astype(jnp.float32) * jnp.float32(distance_scale)

    # Row tile (in packed rows) sized so double-buffered blocks stay well inside
    # the default scoped-VMEM limit on every TPU generation.
    itemsize = x.dtype.itemsize
    bytes_per_packed_row = 2 * (2 * W * itemsize + pack * 512)   # x in/out + pos slabs
    max_tile = max(8, min(4096, (vmem_budget_bytes // bytes_per_packed_row) // 8 * 8))

    n_packed_min = -(-n_rows // pack)          # cdiv
    if n_packed_min <= max_tile:
        row_tile, grid_rows = n_packed_min, 1  # single full-extent block
    else:
        row_tile = max_tile
        grid_rows = -(-n_packed_min // row_tile)
    rows_total = grid_rows * row_tile * pack

    if rows_total != n_rows:                   # remainder handling: pad + slice back
        pad = rows_total - n_rows
        x2d = jnp.pad(x2d, ((0, pad), (0, 0)))
        pos = jnp.pad(pos, (0, pad))
    n_packed = rows_total // pack

    xp = x2d.reshape(n_packed, W)                                    # free reshape
    posp = pos.reshape(n_packed, pack).T.reshape(pack, n_packed, 1)  # tiny array

    # Small per-lane constants (kept resident across the grid).
    lane = jnp.arange(W)
    freq_lane = jnp.tile(jnp.concatenate([inv_freq, inv_freq]), pack)        # (W,)
    group_onehot = (lane[None, :] // H == jnp.arange(pack)[:, None])
    freqs = (group_onehot.astype(jnp.float32) * freq_lane[None, :]).reshape(pack, 1, W)
    mask_first = ((lane % H) < half).astype(jnp.float32).reshape(1, W)

    kernel = functools.partial(_rope_kernel, pack=pack, half=half)
    out = pl.pallas_call(
        kernel,
        out_shape=jax.ShapeDtypeStruct((n_packed, W), dtype),
        grid=(grid_rows,),
        in_specs=[
            pl.BlockSpec((row_tile, W), lambda i: (i, 0)),           # x (lane-dense)
            pl.BlockSpec((pack, row_tile, 1), lambda i: (0, i, 0)),  # positions
            pl.BlockSpec((pack, 1, W), lambda i: (0, 0, 0)),         # freqs (resident)
            pl.BlockSpec((1, W), lambda i: (0, 0)),                  # mask (resident)
        ],
        out_specs=pl.BlockSpec((row_tile, W), lambda i: (i, 0)),
        compiler_params=pltpu.CompilerParams(dimension_semantics=("parallel",)),
    )(xp, posp, freqs, mask_first)

    out2d = out.reshape(rows_total, H)
    if rows_total != n_rows:
        out2d = out2d[:n_rows]
    return out2d.reshape(orig_shape)


def cpmbee_rotary_reference(x, x_pos, inv_freq, distance_scale):
    """Pure-JAX reference mirroring the PyTorch forward exactly."""
    dtype = x.dtype
    x_pos = x_pos * distance_scale
    freqs = x_pos[..., None].astype(dtype) * inv_freq[None, :].astype(dtype)
    emb = jnp.concatenate([freqs, freqs], axis=-1)
    emb_cos = jnp.cos(emb)
    emb_sin = jnp.sin(emb)
    half = x.shape[-1] // 2
    rotate_x = jnp.concatenate([-x[..., half:], x[..., :half]], axis=-1)
    return x * emb_cos + rotate_x * emb_sin


if __name__ == "__main__":
    def _check(hidden_size, batch, seq, key):
        distance_scale = 16.0   # CpmBee default
        inv_freq = 1.0 / 10000.0 ** (
            jnp.arange(0, hidden_size, 2, dtype=jnp.float32) / hidden_size)
        kx, kp = jax.random.split(key)
        x = jax.random.normal(kx, (batch, seq, hidden_size), dtype=jnp.float32)
        x_pos = jax.random.randint(kp, (batch, seq), 0, 64).astype(jnp.float32)

        out = jax.block_until_ready(
            cpmbee_rotary_embedding(x, x_pos, inv_freq, distance_scale))
        ref = cpmbee_rotary_reference(x, x_pos, inv_freq, distance_scale)
        assert out.shape == x.shape and out.dtype == x.dtype
        assert jnp.allclose(out, ref, atol=1e-5, rtol=1e-5), (
            f"mismatch vs reference (hidden={hidden_size})")

    key = jax.random.PRNGKey(0)
    k1, k2 = jax.random.split(key)
    _check(hidden_size=32, batch=2, seq=8, key=k1)    # packed lane-dense path (pack=4)
    _check(hidden_size=256, batch=2, seq=8, key=k2)   # wide path (pack=1, cos/sin dedup)
    print("KERNEL_OK")
</pallas_src>

<mosaic_0001>
module attributes {stable_mosaic.version = 11 : i64} {
  func.func @_rope_kernel(%arg0: i32, %arg1: memref<4x128xf32, #tpu.memory_space<vmem>>, %arg2: memref<4x4x1xf32, #tpu.memory_space<vmem>>, %arg3: memref<4x1x128xf32, #tpu.memory_space<vmem>>, %arg4: memref<1x128xf32, #tpu.memory_space<vmem>>, %arg5: memref<4x128xf32, #tpu.memory_space<vmem>>) attributes {dimension_semantics = [#tpu.dimension_semantics<parallel>], iteration_bounds = array<i64: 1>, scalar_prefetch = 0 : i64, scratch_operands = 0 : i64, tpu.core_type = #tpu.core_type<tc>, window_params = [{transform_indices = @transform_0, window_bounds = array<i64: 4, 128>}, {transform_indices = @transform_1, window_bounds = array<i64: 4, 4, 1>}, {pipeline_mode = #tpu.pipeline_mode<synchronous>, transform_indices = @transform_2, window_bounds = array<i64: 4, 1, 128>}, {pipeline_mode = #tpu.pipeline_mode<synchronous>, transform_indices = @transform_3, window_bounds = array<i64: 1, 128>}, {transform_indices = @transform_4, window_bounds = array<i64: 4, 128>}]} {
    %c0 = arith.constant 0 : index
    %c0_0 = arith.constant 0 : index
    %0 = vector.load %arg1[%c0, %c0_0] : memref<4x128xf32, #tpu.memory_space<vmem>>, vector<4x128xf32>
    %c0_1 = arith.constant 0 : index
    %c0_2 = arith.constant 0 : index
    %c0_3 = arith.constant 0 : index
    %1 = vector.load %arg2[%c0_1, %c0_2, %c0_3] : memref<4x4x1xf32, #tpu.memory_space<vmem>>, vector<1x4x1xf32>
    %2 = vector.shape_cast %1 : vector<1x4x1xf32> to vector<4x1xf32>
    %c0_4 = arith.constant 0 : index
    %c0_5 = arith.constant 0 : index
    %c0_6 = arith.constant 0 : index
    %3 = vector.load %arg3[%c0_4, %c0_5, %c0_6] : memref<4x1x128xf32, #tpu.memory_space<vmem>>, vector<1x1x128xf32>
    %4 = vector.shape_cast %3 : vector<1x1x128xf32> to vector<1x128xf32>
    %5 = vector.broadcast %2 : vector<4x1xf32> to vector<4x128xf32>
    %6 = vector.broadcast %4 : vector<1x128xf32> to vector<4x128xf32>
    %7 = arith.mulf %5, %6 : vector<4x128xf32>
    %c1 = arith.constant 1 : index
    %c0_7 = arith.constant 0 : index
    %c0_8 = arith.constant 0 : index
    %8 = vector.load %arg2[%c1, %c0_7, %c0_8] : memref<4x4x1xf32, #tpu.memory_space<vmem>>, vector<1x4x1xf32>
    %9 = vector.shape_cast %8 : vector<1x4x1xf32> to vector<4x1xf32>
    %c1_9 = arith.constant 1 : index
    %c0_10 = arith.constant 0 : index
    %c0_11 = arith.constant 0 : index
    %10 = vector.load %arg3[%c1_9, %c0_10, %c0_11] : memref<4x1x128xf32, #tpu.memory_space<vmem>>, vector<1x1x128xf32>
    %11 = vector.shape_cast %10 : vector<1x1x128xf32> to vector<1x128xf32>
    %12 = vector.broadcast %9 : vector<4x1xf32> to vector<4x128xf32>
    %13 = vector.broadcast %11 : vector<1x128xf32> to vector<4x128xf32>
    %14 = arith.mulf %12, %13 : vector<4x128xf32>
    %15 = arith.addf %7, %14 : vector<4x128xf32>
    %c2 = arith.constant 2 : index
    %c0_12 = arith.constant 0 : index
    %c0_13 = arith.constant 0 : index
    %16 = vector.load %arg2[%c2, %c0_12, %c0_13] : memref<4x4x1xf32, #tpu.memory_space<vmem>>, vector<1x4x1xf32>
    %17 = vector.shape_cast %16 : vector<1x4x1xf32> to vector<4x1xf32>
    %c2_14 = arith.constant 2 : index
    %c0_15 = arith.constant 0 : index
    %c0_16 = arith.constant 0 : index
    %18 = vector.load %arg3[%c2_14, %c0_15, %c0_16] : memref<4x1x128xf32, #tpu.memory_space<vmem>>, vector<1x1x128xf32>
    %19 = vector.shape_cast %18 : vector<1x1x128xf32> to vector<1x128xf32>
    %20 = vector.broadcast %17 : vector<4x1xf32> to vector<4x128xf32>
    %21 = vector.broadcast %19 : vector<1x128xf32> to vector<4x128xf32>
    %22 = arith.mulf %20, %21 : vector<4x128xf32>
    %23 = arith.addf %15, %22 : vector<4x128xf32>
    %c3 = arith.constant 3 : index
    %c0_17 = arith.constant 0 : index
    %c0_18 = arith.constant 0 : index
    %24 = vector.load %arg2[%c3, %c0_17, %c0_18] : memref<4x4x1xf32, #tpu.memory_space<vmem>>, vector<1x4x1xf32>
    %25 = vector.shape_cast %24 : vector<1x4x1xf32> to vector<4x1xf32>
    %c3_19 = arith.constant 3 : index
    %c0_20 = arith.constant 0 : index
    %c0_21 = arith.constant 0 : index
    %26 = vector.load %arg3[%c3_19, %c0_20, %c0_21] : memref<4x1x128xf32, #tpu.memory_space<vmem>>, vector<1x1x128xf32>
    %27 = vector.shape_cast %26 : vector<1x1x128xf32> to vector<1x128xf32>
    %28 = vector.broadcast %25 : vector<4x1xf32> to vector<4x128xf32>
    %29 = vector.broadcast %27 : vector<1x128xf32> to vector<4x128xf32>
    %30 = arith.mulf %28, %29 : vector<4x128xf32>
    %31 = arith.addf %23, %30 : vector<4x128xf32>
    %32 = math.cos %31 : vector<4x128xf32>
    %33 = math.sin %31 : vector<4x128xf32>
    %c16_i32 = arith.constant 16 : i32
    %34 = tpu.dynamic_rotate %0 by %c16_i32 dim 1 : vector<4x128xf32>, i32 -> vector<4x128xf32>
    %c112_i32 = arith.constant 112 : i32
    %35 = tpu.dynamic_rotate %0 by %c112_i32 dim 1 : vector<4x128xf32>, i32 -> vector<4x128xf32>
    %36 = tpu.iota {dimensions = array<i32: 1>} : vector<1x128xi32>
    %37 = arith.sitofp %36 : vector<1x128xi32> to vector<1x128xf32>
    %c16_i32_22 = arith.constant 16 : i32
    %38 = tpu.dynamic_rotate %37 by %c16_i32_22 dim 1 : vector<1x128xf32>, i32 -> vector<1x128xf32>
    %cst = arith.constant 1.120000e+02 : f32
    %39 = vector.broadcast %cst : f32 to vector<1x128xf32>
    %40 = arith.cmpf olt, %37, %39 : vector<1x128xf32>
    %cst_23 = arith.constant 1.600000e+01 : f32
    %41 = vector.broadcast %cst_23 : f32 to vector<1x128xf32>
    %42 = arith.addf %37, %41 : vector<1x128xf32>
    %cst_24 = arith.constant -1.120000e+02 : f32
    %43 = vector.broadcast %cst_24 : f32 to vector<1x128xf32>
    %44 = arith.addf %37, %43 : vector<1x128xf32>
    %45 = arith.select %40, %42, %44 : vector<1x128xi1>, vector<1x128xf32>
    %46 = arith.cmpf oeq, %38, %45 : vector<1x128xf32>
    %c0_25 = arith.constant 0 : index
    %c0_26 = arith.constant 0 : index
    %47 = vector.load %arg4[%c0_25, %c0_26] : memref<1x128xf32, #tpu.memory_space<vmem>>, vector<1x128xf32>
    %cst_27 = arith.constant 1.000000e+00 : f32
    %48 = vector.broadcast %cst_27 : f32 to vector<1x128xf32>
    %49 = arith.subf %48, %47 : vector<1x128xf32>
    %cst_28 = arith.constant 0.000000e+00 : f32
    %50 = vector.broadcast %cst_28 : f32 to vector<1x128xf32>
    %51 = arith.subf %50, %47 : vector<1x128xf32>
    %52 = arith.select %46, %51, %49 : vector<1x128xi1>, vector<1x128xf32>
    %cst_29 = arith.constant 0.000000e+00 : f32
    %53 = vector.broadcast %cst_29 : f32 to vector<1x128xf32>
    %54 = arith.subf %53, %47 : vector<1x128xf32>
    %55 = arith.select %46, %49, %54 : vector<1x128xi1>, vector<1x128xf32>
    %56 = arith.mulf %0, %32 : vector<4x128xf32>
    %57 = vector.broadcast %52 : vector<1x128xf32> to vector<4x128xf32>
    %58 = arith.mulf %33, %57 : vector<4x128xf32>
    %59 = arith.mulf %34, %58 : vector<4x128xf32>
    %60 = arith.addf %56, %59 : vector<4x128xf32>
    %61 = vector.broadcast %55 : vector<1x128xf32> to vector<4x128xf32>
    %62 = arith.mulf %33, %61 : vector<4x128xf32>
    %63 = arith.mulf %35, %62 : vector<4x128xf32>
    %64 = arith.addf %60, %63 : vector<4x128xf32>
    %c0_30 = arith.constant 0 : index
    %c0_31 = arith.constant 0 : index
    %65 = vector.load %arg5[%c0_30, %c0_31] : memref<4x128xf32, #tpu.memory_space<vmem>>, vector<4x128xf32>
    tpu.vector_store %arg5[%c0_30, %c0_31], %64 {strides = array<i32>} : memref<4x128xf32, #tpu.memory_space<vmem>>, vector<4x128xf32>,
    return
  }
  func.func @transform_0(%arg0: i32) -> (i32, i32) {
    %c0_i32 = arith.constant 0 : i32
    %c0_i32_0 = arith.constant 0 : i32
    return %arg0, %c0_i32 : i32, i32
  }
  func.func @transform_1(%arg0: i32) -> (i32, i32, i32) {
    %c0_i32 = arith.constant 0 : i32
    %c0_i32_0 = arith.constant 0 : i32
    %c0_i32_1 = arith.constant 0 : i32
    return %c0_i32, %arg0, %c0_i32_0 : i32, i32, i32
  }
  func.func @transform_2(%arg0: i32) -> (i32, i32, i32) {
    %c0_i32 = arith.constant 0 : i32
    %c0_i32_0 = arith.constant 0 : i32
    %c0_i32_1 = arith.constant 0 : i32
    %c0_i32_2 = arith.constant 0 : i32
    return %c0_i32, %c0_i32_0, %c0_i32_1 : i32, i32, i32
  }
  func.func @transform_3(%arg0: i32) -> (i32, i32) {
    %c0_i32 = arith.constant 0 : i32
    %c0_i32_0 = arith.constant 0 : i32
    %c0_i32_1 = arith.constant 0 : i32
    return %c0_i32, %c0_i32_0 : i32, i32
  }
  func.func @transform_4(%arg0: i32) -> (i32, i32) {
    %c0_i32 = arith.constant 0 : i32
    %c0_i32_0 = arith.constant 0 : i32
    return %arg0, %c0_i32 : i32, i32
  }
}

</mosaic_0001>

<llo_original>
// kernel: tpu_custom_call.1
$region0: #{tpu_custom_call.1}
  #allocation0 [shape = 'u32[]', space=smem, size = 0x4, offset = 0x4, fixed_abs, tag = 'smem constant byte address 0x4 - core index']
  #allocation1 [shape = 'u32[144,128]{1,0:T(1,128)}', space=vmem, size = 0x12000, scoped, tag = 'internal scratch']
  %s0 = inlined_call_operand.vmem [shape: f32[4,128], index: 0, kind: input, shape index: {}]
  %s1 = inlined_call_operand.vmem [shape: f32[4,4,1], index: 1, kind: input, shape index: {}]
  %s2 = inlined_call_operand.vmem [shape: f32[4,1,128], index: 2, kind: input, shape index: {}]
  %s3 = inlined_call_operand.vmem [shape: f32[1,128], index: 3, kind: input, shape index: {}]
  %s4 = inlined_call_operand.hbm [shape: f32[4,128], index: 4, kind: output, shape index: {}]
  %s5 = sld [smem:[#allocation0]]
  $region26: #{tpu_custom_call.1} parent=0
    _
  %s7 = ssub.s32 1, %s5
  %s8 = scalar_select 0, %s7, %s5
  $region1: #{tpu_custom_call.1} parent=0
    #allocation2 [shape = 'u8[2048]{0}', space=vmem, size = 0x800, scoped, tag = 'output window, operand 0, single buffered']
    #allocation3 [shape = 's32[1]{0}', space=sflag, size = 0x4, scoped, tag = 'scoped memory for tpu_custom_call.1']
    %9 = vsyncpa [#allocation3], 0
    // Predicated region
    $region2: #{tpu_custom_call.1} parent=1 // pred_check
      _
    $region3: #{tpu_custom_call.1} parent=1 // pred_check_branch
      %11 = sbr.rel (0) target = $region5
    $region4: #{tpu_custom_call.1} parent=1 // pred_region
      _
    $region5: #{tpu_custom_call.1} parent=1 // pred_fallthru
      _
    // Predicated region
    $region6: #{tpu_custom_call.1} parent=1 // pred_check
      _
    $region7: #{tpu_custom_call.1} parent=1 // pred_check_branch
      %13 = sbr.rel (0) target = $region9
    $region8: #{tpu_custom_call.1} parent=1 // pred_region
      _
    $region9: #{tpu_custom_call.1} parent=1 // pred_fallthru
      _
    // Predicated region
    $region10: #{tpu_custom_call.1} parent=1 // pred_check
      _
    $region11: #{tpu_custom_call.1} parent=1 // pred_check_branch
      %15 = sbr.rel (0) target = $region13
    $region12: #{tpu_custom_call.1} parent=1 // pred_region
      _
    $region13: #{tpu_custom_call.1} parent=1 // pred_fallthru
      _
    // Predicated region
    $region14: #{tpu_custom_call.1} parent=1 // pred_check
      _
    $region15: #{tpu_custom_call.1} parent=1 // pred_check_branch
      %17 = sbr.rel (0) target = $region17
    $region16: #{tpu_custom_call.1} parent=1 // pred_region
      _
    $region17: #{tpu_custom_call.1} parent=1 // pred_fallthru
      _
    %v18 = vld [vmem:[%s0] sm:$0xf]
    %v19 = vld [vmem:[%s1] sm:$0xf]
    %v20 = vld [vmem:[%s2] sm:$0x1]
    %22 = vset.pattern.permute.xlu0 0
    %23 = vperm.xlu0 %22, %v19
    %v24 = vpop.permute.xlu0 %23
    %v27 = vlaneseq
    %v28 = vshrl.u32 %v27, 7
    %v29 = vsub.s32 0, %v28
    %v30 = vrot.slane %v20, %v29
    %v32 = vmul.f32 %v24, %v30
    %s33 = scalar_lea.vmem %s1, 4
    %v34 = vld [vmem:[%s33] sm:$0xf]
    %s35 = scalar_lea.vmem %s2, 1
    %v36 = vld [vmem:[%s35] sm:$0x1]
    %38 = vset.pattern.permute.xlu0 0
    %39 = vperm.xlu0 %38, %v34
    %v40 = vpop.permute.xlu0 %39
    %v43 = vlaneseq
    %v44 = vshrl.u32 %v43, 7
    %v45 = vsub.s32 0, %v44
    %v46 = vrot.slane %v36, %v45
    %v48 = vmul.f32 %v40, %v46
    %v49 = vadd.f32 %v32, %v48
    %s50 = scalar_lea.vmem %s1, 8
    %v51 = vld [vmem:[%s50] sm:$0xf]
    %s52 = scalar_lea.vmem %s2, 2
    %v53 = vld [vmem:[%s52] sm:$0x1]
    %55 = vset.pattern.permute.xlu0 0
    %56 = vperm.xlu0 %55, %v51
    %v57 = vpop.permute.xlu0 %56
    %v60 = vlaneseq
    %v61 = vshrl.u32 %v60, 7
    %v62 = vsub.s32 0, %v61
    %v63 = vrot.slane %v53, %v62
    %v65 = vmul.f32 %v57, %v63
    %v66 = vadd.f32 %v49, %v65
    %s67 = scalar_lea.vmem %s1, 12
    %v68 = vld [vmem:[%s67] sm:$0xf]
    %s69 = scalar_lea.vmem %s2, 3
    %v70 = vld [vmem:[%s69] sm:$0x1]
    %72 = vset.pattern.permute.xlu0 0
    %73 = vperm.xlu0 %72, %v68
    %v74 = vpop.permute.xlu0 %73
    %v77 = vlaneseq
    %v78 = vshrl.u32 %v77, 7
    %v79 = vsub.s32 0, %v78
    %v80 = vrot.slane %v70, %v79
    %v82 = vmul.f32 %v74, %v80
    %v83 = vadd.f32 %v66, %v82
    %v84 = vand.u32 2147483647, %v83
    %vm85 = vcmp.le.f32.partialorder %v84, 0.7853982
    %vm86 = vcmp.lt.s32.totalorder %v83, 0
    %v87 = vand.u32 %v83, 2139095040
    %v88 = vshrl.u32 %v87, 23
    %v89 = vsub.s32 %v88, 127
    %v90 = vand.u32 2147483647, %v83
    %v91 = vand.u32 %v90, 8388607
    %v92 = vor.u32 %v91, 8388608
    %v93 = vsub.s32 0, %v92
    %v94 = vadd.s32 %v89, 1
    %vm95 = vcmp.gt.s32.totalorder %v94, 0
    %v96 = vsel %vm95, %v94, 0
    %v97 = vshrl.u32 %v96, 5
    %v98 = vand.u32 %v96, 31
    %v99 = vsub.s32 32, %v98
    %v100 = vshrl.u32 683565275, %v99
    %v101 = vshll.u32 683565275, %v98
    %v102 = vshrl.u32 2475754826, %v99
    %v103 = vor.u32 %v101, %v102
    %v104 = vshll.u32 2475754826, %v98
    %v105 = vshrl.u32 2131351028, %v99
    %v106 = vor.u32 %v104, %v105
    %v107 = vshll.u32 2131351028, %v98
    %v108 = vshrl.u32 2102212464, %v99
    %v109 = vor.u32 %v107, %v108
    %v110 = vshll.u32 2102212464, %v98
    %v111 = vshrl.u32 920167782, %v99
    %v112 = vor.u32 %v110, %v111
    %v113 = vshll.u32 920167782, %v98
    %v114 = vshrl.u32 1326507024, %v99
    %v115 = vor.u32 %v113, %v114
    %vm116 = vcmp.lt.s32.totalorder %v97, 1
    %vm117 = vcmp.lt.s32.totalorder %v97, 2
    %vm118 = vcmp.lt.s32.totalorder %v97, 3
    %vm119 = vcmp.lt.s32.totalorder %v97, 4
    %v120 = vsel %vm116, %v100, %v103
    %v121 = vsel %vm119, %v109, 2102212464
    %v122 = vsel %vm118, %v106, %v121
    %v123 = vsel %vm117, %v120, %v122
    %v124 = vsel %vm116, %v103, %v106
    %v125 = vsel %vm119, %v112, 920167782
    %v126 = vsel %vm118, %v109, %v125
    %v127 = vsel %vm117, %v124, %v126
    %v128 = vsel %vm116, %v106, %v109
    %v129 = vsel %vm119, %v115, 1326507024
    %v130 = vsel %vm118, %v112, %v129
    %v131 = vsel %vm117, %v128, %v130
    %v132 = vshll.u32 %v92, 8
    %v133 = vmul.u32.u64.compose %v132, %v131
    %v134 = vextract.low.u32 %v133
    %v135 = vextract.high.u32 %v133
    %v136 = vmul.u32.u64.compose %v132, %v127
    %v137 = vextract.low.u32 %v136
    %v138 = vextract.high.u32 %v136
    %v139 = vmul.u32 %v132, %v123
    %v140 = vadd.s32 %v135, %v137
    %vm141 = vc.u32 %v135, %v137
    %v142 = vadd.s32 %v138, 1
    %v143 = vsel %vm141, %v142, %v138
    %v144 = vadd.s32 %v139, %v143
    %v145 = vadd.s32 %v144, 536870912
    %v146 = vshrl.u32 %v145, 30
    %v147 = vshll.u32 %v146, 30
    %v148 = vsub.s32 %v144, %v147
    %vm149 = vcmp.lt.s32.totalorder %v148, 0
    %v150 = vsub.s32 0, %v148
    %v151 = vsel %vm149, %v150, %v148
    %v152 = vclz %v151
    %v153 = vsub.s32 %v152, 2
    %vm154 = vcmp.gt.s32.totalorder 0, %v153
    %v155 = vsel %vm154, 0, %v153
    %v156 = vsub.s32 32, %v155
    %v157 = vshll.u32 %v148, %v155
    %v158 = vshrl.u32 %v140, %v156
    %v159 = vor.u32 %v157, %v158
    %v160 = vsub.s32 4294967266, %v155
    %v161 = vadd.s32 %v160, 127
    %v162 = vshll.u32 %v161, 23
    %v163 = vor.u32 4788187, %v162
    %v164 = vand.u32 2147483647, %v163
    %v166 = vcvt.s32.f32 %v159
    %v167 = vmul.f32 %v166, %v164
    %v168 = vxor.u32 %v167, 2147483648
    %v169 = vsel %vm86, %v168, %v167
    %v170 = vsub.s32 4, %v146
    %v171 = vsel %vm86, %v170, %v146
    %v172 = vsel %vm85, %v83, %v169
    %v173 = vsel %vm85, 0, %v171
    %v174 = vcosq.f32.pop %v172
    %v175 = vsinq.f32.pop %v172
    %vm176 = vweird.f32 %v83
    %v177 = vand.u32 %v173, 3
    %vm178 = vcmp.lt.s32.totalorder %v177, 2
    %vm179 = vcmp.eq.s32.totalorder %v177, 0
    %v180 = vxor.u32 %v175, 2147483648
    %v181 = vsel %vm179, %v174, %v180
    %vm182 = vcmp.eq.s32.totalorder %v177, 2
    %v183 = vxor.u32 %v174, 2147483648
    %v184 = vsel %vm182, %v183, %v175
    %v185 = vsel %vm178, %v181, %v184
    %v186 = vsel %vm176, nan, %v185
    %v187 = vand.u32 2147483647, %v83
    %vm188 = vcmp.le.f32.partialorder %v187, 0.7853982
    %vm189 = vcmp.lt.s32.totalorder %v83, 0
    %v190 = vand.u32 %v83, 2139095040
    %v191 = vshrl.u32 %v190, 23
    %v192 = vsub.s32 %v191, 127
    %v193 = vand.u32 2147483647, %v83
    %v194 = vand.u32 %v193, 8388607
    %v195 = vor.u32 %v194, 8388608
    %v196 = vsub.s32 0, %v195
    %v197 = vadd.s32 %v192, 1
    %vm198 = vcmp.gt.s32.totalorder %v197, 0
    %v199 = vsel %vm198, %v197, 0
    %v200 = vshrl.u32 %v199, 5
    %v201 = vand.u32 %v199, 31
    %v202 = vsub.s32 32, %v201
    %v203 = vshrl.u32 683565275, %v202
    %v204 = vshll.u32 683565275, %v201
    %v205 = vshrl.u32 2475754826, %v202
    %v206 = vor.u32 %v204, %v205
    %v207 = vshll.u32 2475754826, %v201
    %v208 = vshrl.u32 2131351028, %v202
    %v209 = vor.u32 %v207, %v208
    %v210 = vshll.u32 2131351028, %v201
    %v211 = vshrl.u32 2102212464, %v202
    %v212 = vor.u32 %v210, %v211
    %v213 = vshll.u32 2102212464, %v201
    %v214 = vshrl.u32 920167782, %v202
    %v215 = vor.u32 %v213, %v214
    %v216 = vshll.u32 920167782, %v201
    %v217 = vshrl.u32 1326507024, %v202
    %v218 = vor.u32 %v216, %v217
    %vm219 = vcmp.lt.s32.totalorder %v200, 1
    %vm220 = vcmp.lt.s32.totalorder %v200, 2
    %vm221 = vcmp.lt.s32.totalorder %v200, 3
    %vm222 = vcmp.lt.s32.totalorder %v200, 4
    %v223 = vsel %vm219, %v203, %v206
    %v224 = vsel %vm222, %v212, 2102212464
    %v225 = vsel %vm221, %v209, %v224
    %v226 = vsel %vm220, %v223, %v225
    %v227 = vsel %vm219, %v206, %v209
    %v228 = vsel %vm222, %v215, 920167782
    %v229 = vsel %vm221, %v212, %v228
    %v230 = vsel %vm220, %v227, %v229
    %v231 = vsel %vm219, %v209, %v212
    %v232 = vsel %vm222, %v218, 1326507024
    %v233 = vsel %vm221, %v215, %v232
    %v234 = vsel %vm220, %v231, %v233
    %v235 = vshll.u32 %v195, 8
    %v236 = vmul.u32.u64.compose %v235, %v234
    %v237 = vextract.low.u32 %v236
    %v238 = vextract.high.u32 %v236
    %v239 = vmul.u32.u64.compose %v235, %v230
    %v240 = vextract.low.u32 %v239
    %v241 = vextract.high.u32 %v239
    %v242 = vmul.u32 %v235, %v226
    %v243 = vadd.s32 %v238, %v240
    %vm244 = vc.u32 %v238, %v240
    %v245 = vadd.s32 %v241, 1
    %v246 = vsel %vm244, %v245, %v241
    %v247 = vadd.s32 %v242, %v246
    %v248 = vadd.s32 %v247, 536870912
    %v249 = vshrl.u32 %v248, 30
    %v250 = vshll.u32 %v249, 30
    %v251 = vsub.s32 %v247, %v250
    %vm252 = vcmp.lt.s32.totalorder %v251, 0
    %v253 = vsub.s32 0, %v251
    %v254 = vsel %vm252, %v253, %v251
    %v255 = vclz %v254
    %v256 = vsub.s32 %v255, 2
    %vm257 = vcmp.gt.s32.totalorder 0, %v256
    %v258 = vsel %vm257, 0, %v256
    %v259 = vsub.s32 32, %v258
    %v260 = vshll.u32 %v251, %v258
    %v261 = vshrl.u32 %v243, %v259
    %v262 = vor.u32 %v260, %v261
    %v263 = vsub.s32 4294967266, %v258
    %v264 = vadd.s32 %v263, 127
    %v265 = vshll.u32 %v264, 23
    %v266 = vor.u32 4788187, %v265
    %v267 = vand.u32 2147483647, %v266
    %v269 = vcvt.s32.f32 %v262
    %v270 = vmul.f32 %v269, %v267
    %v271 = vxor.u32 %v270, 2147483648
    %v272 = vsel %vm189, %v271, %v270
    %v273 = vsub.s32 4, %v249
    %v274 = vsel %vm189, %v273, %v249
    %v275 = vsel %vm188, %v83, %v272
    %v276 = vsel %vm188, 0, %v274
    %v277 = vcosq.f32.pop %v275
    %v278 = vsinq.f32.pop %v275
    %vm279 = vweird.f32 %v83
    %v280 = vadd.s32 %v276, 3
    %v281 = vand.u32 %v280, 3
    %vm282 = vcmp.lt.s32.totalorder %v281, 2
    %vm283 = vcmp.eq.s32.totalorder %v281, 0
    %v284 = vxor.u32 %v278, 2147483648
    %v285 = vsel %vm283, %v277, %v284
    %vm286 = vcmp.eq.s32.totalorder %v281, 2
    %v287 = vxor.u32 %v277, 2147483648
    %v288 = vsel %vm286, %v287, %v278
    %v289 = vsel %vm282, %v285, %v288
    %v290 = vsel %vm279, nan, %v289
    %291 = vrot.lane.b32.xlu0 %v18, 16
    %v292 = vpop.permute.xlu0 %291
    %293 = vrot.lane.b32.xlu0 %v18, 112
    %v294 = vpop.permute.xlu0 %293
    %v295 = vlaneseq
    %v296 = vand.u32 %v295, 127
    %v297 = vcvt.s32.f32 %v296
    %298 = vrot.lane.b32.xlu0 %v297, 16
    %v299 = vpop.permute.xlu0 %298
    %vm300 = vcmp.lt.f32.partialorder %v297, 112.0
    %v301 = vadd.f32 %v297, 16.0
    %v302 = vadd.f32 %v297, -112.0
    %v303 = vsel %vm300, %v301, %v302
    %vm304 = vcmp.eq.f32.partialorder %v299, %v303
    %v305 = vld [vmem:[%s3] sm:$0x1]
    %v306 = vsub.f32 1.0, %v305
    %v307 = vsub.f32 0.0, %v305
    %v308 = vsel %vm304, %v307, %v306
    %v309 = vsel %vm304, %v306, %v307
    %v310 = vmul.f32 %v18, %v186
    %v311 = vlaneseq
    %v312 = vshrl.u32 %v311, 7
    %v313 = vsub.s32 0, %v312
    %v314 = vrot.slane %v308, %v313
    %v315 = vmul.f32 %v290, %v314
    %v316 = vmul.f32 %v292, %v315
    %v317 = vadd.f32 %v310, %v316
    %v318 = vlaneseq
    %v319 = vshrl.u32 %v318, 7
    %v320 = vsub.s32 0, %v319
    %v321 = vrot.slane %v309, %v320
    %v322 = vmul.f32 %v290, %v321
    %v323 = vmul.f32 %v294, %v322
    %v324 = vadd.f32 %v317, %v323
    %325 = vst [vmem:[#allocation2] sm:$0xf] %v324
    // Predicated region
    $region18: #{tpu_custom_call.1} parent=1 // pred_check
      _
    $region19: #{tpu_custom_call.1} parent=1 // pred_check_branch
      %327 = sbr.rel (0) target = $region21
    $region20: #{tpu_custom_call.1} parent=1 // pred_region
      %s329 = ssub.s32 64, 64
      %330 = vsyncadd [#allocation3], %s329
      %s332 = sshll.u32 [#allocation2], 4
      %s333 = int_to_ptr.vmem [resolvable:$true] %s332
      %335 = dma.vmem_to_hbm [thread:$0]  %s333, 64, %s4, [#allocation3]
    $region21: #{tpu_custom_call.1} parent=1 // pred_fallthru
      _
    // Predicated region
    $region22: #{tpu_custom_call.1} parent=1 // pred_check
      _
    $region23: #{tpu_custom_call.1} parent=1 // pred_check_branch
      %337 = sbr.rel (0) target = $region25
    $region24: #{tpu_custom_call.1} parent=1 // pred_region
      %338 = dma.done [#allocation3], 64
    $region25: #{tpu_custom_call.1} parent=1 // pred_fallthru
      _
    %339 = vsyncpa [#allocation3], 1

</llo_original>
